<compile_context>
chip_gen: v6e
topology: v6e:2x2x1
jax: 0.10.0
libtpu: 0.0.40
codegen_flags: <defaults>
</compile_context>

<pallas_src>
import math

import jax
import jax.numpy as jnp
from jax.experimental import pallas as pl
from jax.experimental.pallas import tpu as pltpu


def _build_pe_table(max_len: int, d_model: int, dtype=jnp.float32) -> jnp.ndarray:
    """Deterministic positional-encoding table, matching the PyTorch __init__."""
    position = jnp.arange(0, max_len, dtype=jnp.float32)[:, None]            # (max_len, 1)
    div_term = jnp.exp(
        jnp.arange(0, d_model, 2, dtype=jnp.float32) * (-math.log(10000.0) / d_model)
    )                                                                         # (d_model//2,)
    angles = position * div_term                                              # (max_len, d_model//2)
    pe = jnp.zeros((max_len, d_model), dtype=jnp.float32)
    pe = pe.at[:, 0::2].set(jnp.sin(angles))
    pe = pe.at[:, 1::2].set(jnp.cos(angles))
    return pe.astype(dtype)                                                   # (max_len, d_model)


def _pos_enc_kernel_2d(x_ref, pe_ref, o_ref):
    # Batch dim squeezed out: x_ref / o_ref / pe_ref are all (TILE_S, D).
    # No broadcast, no cast — a single lane-dense VPU add + store.
    o_ref[...] = x_ref[...] + pe_ref[...]


def _pos_enc_kernel_3d(x_ref, pe_ref, o_ref):
    # x_ref / o_ref: (TILE_B, TILE_S, D); pe_ref: (TILE_S, D) broadcast over batch.
    o_ref[...] = x_ref[...] + pe_ref[...][None, :, :]


_DEFAULT_TARGET_BLOCK_BYTES = 2 * 1024 * 1024   # ~2 MiB of x per grid step
_VMEM_LIMIT_BYTES = 32 * 1024 * 1024            # safe on v5e/v6e/v7x scoped VMEM


def positional_encoding_forward(
    x: jnp.ndarray,
    pe_full: jnp.ndarray,
    *,
    target_block_bytes: int = _DEFAULT_TARGET_BLOCK_BYTES,
) -> jnp.ndarray:
    """x: (B, S, D); pe_full: (max_len, D). Returns x + pe[:S] (in x.dtype)."""
    b, seq_len, d_model = x.shape
    max_len, pe_d = pe_full.shape
    assert seq_len <= max_len, f"seq_len={seq_len} exceeds max_len={max_len}"
    assert pe_d == d_model, f"d_model mismatch: {pe_d} vs {d_model}"

    # Pre-cast pe once in the wrapper (static slice + cast, no per-step work).
    pe = pe_full[:seq_len, :].astype(x.dtype)                                 # (S, D)

    itemsize = jnp.dtype(x.dtype).itemsize
    sublane = max(8, 32 // itemsize)          # 8 for f32, 16 for bf16, 32 for int8
    row_bytes = d_model * itemsize

    if seq_len * row_bytes <= target_block_bytes:
        # Whole sequence per block; pack several batch elements per grid step.
        tile_s = seq_len
        tile_b = max(1, min(b, target_block_bytes // (seq_len * row_bytes)))
    else:
        # A single batch element's (S, D) slab is too big: tile the sequence
        # in sublane-aligned chunks, one batch element per step.
        tile_b = 1
        tile_s = max(sublane, (target_block_bytes // row_bytes) // sublane * sublane)
        tile_s = min(tile_s, seq_len)

    grid = (pl.cdiv(b, tile_b), pl.cdiv(seq_len, tile_s))

    if tile_b == 1:
        # Squeeze the unit batch dim -> 2-D (sublane, lane) refs in the kernel.
        kernel = _pos_enc_kernel_2d
        x_spec = pl.BlockSpec((None, tile_s, d_model), lambda i, j: (i, j, 0))
        o_spec = pl.BlockSpec((None, tile_s, d_model), lambda i, j: (i, j, 0))
    else:
        kernel = _pos_enc_kernel_3d
        x_spec = pl.BlockSpec((tile_b, tile_s, d_model), lambda i, j: (i, j, 0))
        o_spec = pl.BlockSpec((tile_b, tile_s, d_model), lambda i, j: (i, j, 0))

    # When tile_s == seq_len the pe block index is constant across the grid,
    # so the pipeline fetches it into VMEM exactly once (no re-DMA per step).
    pe_spec = pl.BlockSpec((tile_s, d_model), lambda i, j: (j, 0))

    return pl.pallas_call(
        kernel,
        out_shape=jax.ShapeDtypeStruct((b, seq_len, d_model), x.dtype),
        grid_spec=pltpu.PrefetchScalarGridSpec(
            num_scalar_prefetch=0,
            grid=grid,
            in_specs=[x_spec, pe_spec],
            out_specs=o_spec,
        ),
        compiler_params=pltpu.CompilerParams(
            dimension_semantics=("parallel", "parallel"),
            vmem_limit_bytes=_VMEM_LIMIT_BYTES,
        ),
    )(x, pe)


if __name__ == "__main__":
    key = jax.random.PRNGKey(0)

    # --- Test 1: tiny module-consistent shape (collapses to a single grid step).
    B, S, D = 2, 8, 128
    MAX_LEN = 64
    x = jax.random.normal(key, (B, S, D), dtype=jnp.float32)
    pe_table = _build_pe_table(MAX_LEN, D, dtype=jnp.float32)

    out = positional_encoding_forward(x, pe_table)
    out = jax.block_until_ready(out)

    ref = x + pe_table[None, :S, :]
    assert out.shape == (B, S, D)
    assert jnp.allclose(out, ref, atol=1e-6, rtol=1e-6), "mismatch vs reference (test 1)"

    # --- Test 2: force the multi-step / squeezed-batch tiling path (still small)
    # by shrinking the per-step byte budget.
    B2, S2, D2 = 3, 32, 128
    x2 = jax.random.normal(jax.random.PRNGKey(0), (B2, S2, D2), dtype=jnp.float32)
    pe_table2 = _build_pe_table(MAX_LEN, D2, dtype=jnp.float32)

    out2 = positional_encoding_forward(x2, pe_table2, target_block_bytes=4096)
    out2 = jax.block_until_ready(out2)

    ref2 = x2 + pe_table2[None, :S2, :]
    assert out2.shape == (B2, S2, D2)
    assert jnp.allclose(out2, ref2, atol=1e-6, rtol=1e-6), "mismatch vs reference (test 2)"

    print("KERNEL_OK")
</pallas_src>

<mosaic_0001>
module attributes {stable_mosaic.version = 11 : i64} {
  func.func @_pos_enc_kernel_3d(%arg0: i32, %arg1: i32, %arg2: memref<2x8x128xf32, #tpu.memory_space<vmem>>, %arg3: memref<8x128xf32, #tpu.memory_space<vmem>>, %arg4: memref<2x8x128xf32, #tpu.memory_space<vmem>>) attributes {dimension_semantics = [#tpu.dimension_semantics<parallel>, #tpu.dimension_semantics<parallel>], iteration_bounds = array<i64: 1, 1>, scalar_prefetch = 0 : i64, scratch_operands = 0 : i64, tpu.core_type = #tpu.core_type<tc>, window_params = [{transform_indices = @transform_0, window_bounds = array<i64: 2, 8, 128>}, {transform_indices = @transform_1, window_bounds = array<i64: 8, 128>}, {transform_indices = @transform_2, window_bounds = array<i64: 2, 8, 128>}]} {
    %c0 = arith.constant 0 : index
    %c0_0 = arith.constant 0 : index
    %c0_1 = arith.constant 0 : index
    %0 = vector.load %arg2[%c0, %c0_0, %c0_1] : memref<2x8x128xf32, #tpu.memory_space<vmem>>, vector<2x8x128xf32>
    %c0_2 = arith.constant 0 : index
    %c0_3 = arith.constant 0 : index
    %1 = vector.load %arg3[%c0_2, %c0_3] : memref<8x128xf32, #tpu.memory_space<vmem>>, vector<8x128xf32>
    %2 = vector.shape_cast %1 : vector<8x128xf32> to vector<1x8x128xf32>
    %3 = vector.broadcast %2 : vector<1x8x128xf32> to vector<2x8x128xf32>
    %4 = arith.addf %0, %3 : vector<2x8x128xf32>
    %c0_4 = arith.constant 0 : index
    %c0_5 = arith.constant 0 : index
    %c0_6 = arith.constant 0 : index
    %5 = vector.load %arg4[%c0_4, %c0_5, %c0_6] : memref<2x8x128xf32, #tpu.memory_space<vmem>>, vector<2x8x128xf32>
    tpu.vector_store %arg4[%c0_4, %c0_5, %c0_6], %4 {strides = array<i32>} : memref<2x8x128xf32, #tpu.memory_space<vmem>>, vector<2x8x128xf32>,
    return
  }
  func.func @transform_0(%arg0: i32, %arg1: i32) -> (i32, i32, i32) {
    %c0_i32 = arith.constant 0 : i32
    %c0_i32_0 = arith.constant 0 : i32
    return %arg0, %arg1, %c0_i32 : i32, i32, i32
  }
  func.func @transform_1(%arg0: i32, %arg1: i32) -> (i32, i32) {
    %c0_i32 = arith.constant 0 : i32
    %c0_i32_0 = arith.constant 0 : i32
    return %arg1, %c0_i32 : i32, i32
  }
  func.func @transform_2(%arg0: i32, %arg1: i32) -> (i32, i32, i32) {
    %c0_i32 = arith.constant 0 : i32
    %c0_i32_0 = arith.constant 0 : i32
    return %arg0, %arg1, %c0_i32 : i32, i32, i32
  }
}

</mosaic_0001>

<llo_original>
// kernel: tpu_custom_call.1
$region0: #{tpu_custom_call.1}
  #allocation0 [shape = 'u32[]', space=smem, size = 0x4, offset = 0x4, fixed_abs, tag = 'smem constant byte address 0x4 - core index']
  #allocation1 [shape = 'u32[144,128]{1,0:T(1,128)}', space=vmem, size = 0x12000, scoped, tag = 'internal scratch']
  %s0 = inlined_call_operand.hbm [shape: f32[2,8,128], index: 0, kind: input, shape index: {}]
  %s1 = inlined_call_operand.hbm [shape: f32[8,128], index: 1, kind: input, shape index: {}]
  %s2 = inlined_call_operand.hbm [shape: f32[2,8,128], index: 2, kind: output, shape index: {}]
  %s3 = sld [smem:[#allocation0]]
  $region26: #{tpu_custom_call.1} parent=0
    _
  %s5 = ssub.s32 1, %s3
  %s6 = scalar_select 0, %s5, %s3
  $region1: #{tpu_custom_call.1} parent=0
    #allocation2 [shape = 'u8[8192]{0}', space=vmem, size = 0x2000, scoped, tag = 'input window, operand 0, single buffered']
    #allocation3 [shape = 's32[1]{0}', space=sflag, size = 0x4, scoped, tag = 'scoped memory for tpu_custom_call.1']
    #allocation4 [shape = 's32[1]{0}', space=sflag, size = 0x4, scoped, tag = 'scoped memory for tpu_custom_call.1']
    #allocation5 [shape = 'u8[4096]{0}', space=vmem, size = 0x1000, scoped, tag = 'input window, operand 1, single buffered']
    #allocation6 [shape = 's32[1]{0}', space=sflag, size = 0x4, scoped, tag = 'scoped memory for tpu_custom_call.1']
    #allocation7 [shape = 'u8[8192]{0}', space=vmem, size = 0x2000, scoped, tag = 'output window, operand 0, single buffered']
    %7 = vsyncpa [#allocation3], 0
    %8 = vsyncpa [#allocation6], 0
    %9 = vsyncpa [#allocation4], 0
    // Predicated region
    $region2: #{tpu_custom_call.1} parent=1 // pred_check
      _
    $region3: #{tpu_custom_call.1} parent=1 // pred_check_branch
      %11 = sbr.rel (0) target = $region5
    $region4: #{tpu_custom_call.1} parent=1 // pred_region
      %s13 = ssub.s32 256, 256
      %14 = vsyncadd [#allocation3], %s13
      %s15 = sshll.u32 [#allocation2], 4
      %s16 = int_to_ptr.vmem [resolvable:$true] %s15
      %21 = dma.hbm_to_vmem [thread:$0]  %s0, 256, %s16, [#allocation3], 128, 128, 8
    $region5: #{tpu_custom_call.1} parent=1 // pred_fallthru
      _
    // Predicated region
    $region6: #{tpu_custom_call.1} parent=1 // pred_check
      _
    $region7: #{tpu_custom_call.1} parent=1 // pred_check_branch
      %23 = sbr.rel (0) target = $region9
    $region8: #{tpu_custom_call.1} parent=1 // pred_region
      %s25 = ssub.s32 128, 128
      %26 = vsyncadd [#allocation6], %s25
      %s28 = sshll.u32 [#allocation5], 4
      %s29 = int_to_ptr.vmem [resolvable:$true] %s28
      %31 = dma.hbm_to_vmem [thread:$0]  %s1, 128, %s29, [#allocation6]
    $region9: #{tpu_custom_call.1} parent=1 // pred_fallthru
      _
    // Predicated region
    $region10: #{tpu_custom_call.1} parent=1 // pred_check
      _
    $region11: #{tpu_custom_call.1} parent=1 // pred_check_branch
      %33 = sbr.rel (0) target = $region13
    $region12: #{tpu_custom_call.1} parent=1 // pred_region
      %34 = dma.done [#allocation3], 256
    $region13: #{tpu_custom_call.1} parent=1 // pred_fallthru
      _
    // Predicated region
    $region14: #{tpu_custom_call.1} parent=1 // pred_check
      _
    $region15: #{tpu_custom_call.1} parent=1 // pred_check_branch
      %36 = sbr.rel (0) target = $region17
    $region16: #{tpu_custom_call.1} parent=1 // pred_region
      %37 = dma.done [#allocation6], 128
    $region17: #{tpu_custom_call.1} parent=1 // pred_fallthru
      _
    %v38 = vld [vmem:[#allocation2] sm:$0xff]
    %v39 = vld [vmem:[#allocation2 + $0x8] sm:$0xff]
    %v40 = vld [vmem:[#allocation5] sm:$0xff]
    %v41 = vadd.f32 %v38, %v40
    %v42 = vadd.f32 %v39, %v40
    %43 = vst [vmem:[#allocation7] sm:$0xff] %v41
    %44 = vst [vmem:[#allocation7 + $0x8] sm:$0xff] %v42
    // Predicated region
    $region18: #{tpu_custom_call.1} parent=1 // pred_check
      _
    $region19: #{tpu_custom_call.1} parent=1 // pred_check_branch
      %46 = sbr.rel (0) target = $region21
    $region20: #{tpu_custom_call.1} parent=1 // pred_region
      %s48 = ssub.s32 256, 256
      %49 = vsyncadd [#allocation4], %s48
      %s50 = sshll.u32 [#allocation7], 4
      %s51 = int_to_ptr.vmem [resolvable:$true] %s50
      %56 = dma.vmem_to_hbm [thread:$0]  %s51, 256, %s2, [#allocation4], 128, 128, 8
    $region21: #{tpu_custom_call.1} parent=1 // pred_fallthru
      _
    // Predicated region
    $region22: #{tpu_custom_call.1} parent=1 // pred_check
      _
    $region23: #{tpu_custom_call.1} parent=1 // pred_check_branch
      %58 = sbr.rel (0) target = $region25
    $region24: #{tpu_custom_call.1} parent=1 // pred_region
      %59 = dma.done [#allocation4], 256
    $region25: #{tpu_custom_call.1} parent=1 // pred_fallthru
      _
    %60 = vsyncpa [#allocation3], 1
    %61 = vsyncpa [#allocation6], 1
    %62 = vsyncpa [#allocation4], 1

</llo_original>
